<compile_context>
chip_gen: v5e
topology: v5e:2x2
jax: 0.10.0
libtpu: 0.0.40
codegen_flags: <defaults>
</compile_context>

<pallas_src>
import functools
import math

import jax
import jax.numpy as jnp
import numpy as np
from jax import lax
from jax.experimental import pallas as pl
from jax.experimental.pallas import tpu as pltpu


def _round_up(x, m):
    return ((x + m - 1) // m) * m


# ---------------------------------------------------------------------------
# Fused kernel: conv(+bias) + ReLU + 2x2/2 maxpool + per-tile BN partial sums.
# One grid step consumes an im2col block (KC, 4*TM) holding the tile's four
# pool parities lane-contiguously and produces:
#   y_ref  : (Cout, TM)   bf16  pooled, biased, ReLU'd (pre-BatchNorm)
#   s1_ref : (1, Cout, 1) f32   per-channel sum   over the tile
#   s2_ref : (1, Cout, 1) f32   per-channel sum^2 over the tile
# ---------------------------------------------------------------------------
def _make_fused_kernel(TM):
    def kernel(slab_ref, w_ref, b_ref, y_ref, s1_ref, s2_ref):
        # Single MXU matmul covering all four pool parities of this tile.
        conv4 = jnp.dot(w_ref[...], slab_ref[...],
                        preferred_element_type=jnp.float32)       # (Cout, 4*TM)
        # 2x2 max-pool = max over the four lane-aligned parity slices.
        pooled = jnp.maximum(
            jnp.maximum(conv4[:, 0 * TM:1 * TM], conv4[:, 1 * TM:2 * TM]),
            jnp.maximum(conv4[:, 2 * TM:3 * TM], conv4[:, 3 * TM:4 * TM]))
        # Bias is constant within a pool window and ReLU is monotone, so
        # applying them after the max is exact.
        y = jnp.maximum(pooled + b_ref[...], 0.0)                 # (Cout, TM) f32
        y_ref[...] = y.astype(y_ref.dtype)                        # bf16 store
        # BatchNorm partials in f32 from the pre-cast accumulator.  Padded M
        # columns (all-zero slab) contribute exactly relu(bias_c); the wrapper
        # subtracts that analytically, so no per-tile masking is needed here.
        s1_ref[0] = jnp.sum(y, axis=1, keepdims=True)             # (Cout, 1)
        s2_ref[0] = jnp.sum(y * y, axis=1, keepdims=True)
    return kernel


# ---------------------------------------------------------------------------
# Wrapper-side layout prep (XLA glue).
# ---------------------------------------------------------------------------
def _im2col_parity_slab(x_nhwc, padding, KH, KW, H2, W2, TM, M_pad):
    """Build the (KC, num_tiles*4*TM) bf16 im2col slab.

    Flat column  tile*4*TM + p*TM + j  holds the KH*KW*Cin input values feeding
    conv output (2*h2 + p//2, 2*w2 + p%2) of pooled position
    m = tile*TM + j = n*H2*W2 + h2*W2 + w2.  Row ordering is (kh, kw, cin),
    matching weight.transpose(0,2,3,1).reshape(Cout, KH*KW*Cin).
    """
    N, H, W, Cin = x_nhwc.shape
    M = N * H2 * W2
    nt = M_pad // TM
    xp = jnp.pad(x_nhwc.astype(jnp.bfloat16),
                 ((0, 0), (padding, padding), (padding, padding), (0, 0)))
    rows = []
    for kh in range(KH):
        for kw in range(KW):
            par = []
            for pr in range(2):
                for pc in range(2):
                    r0, c0 = pr + kh, pc + kw
                    t = lax.slice(xp, (0, r0, c0, 0),
                                  (N, r0 + 2 * (H2 - 1) + 1,
                                   c0 + 2 * (W2 - 1) + 1, Cin),
                                  (1, 2, 2, 1))                   # (N,H2,W2,Cin)
                    t = jnp.moveaxis(t, 3, 0).reshape(Cin, M)     # (Cin, M)
                    if M_pad != M:
                        t = jnp.pad(t, ((0, 0), (0, M_pad - M)))  # zero pad
                    par.append(t.reshape(Cin, nt, TM))
            # Parities become lane-contiguous TM-wide blocks inside each tile.
            rows.append(jnp.stack(par, axis=2).reshape(Cin, 4 * M_pad))
    return jnp.concatenate(rows, axis=0)                          # (KC, 4*M_pad)


def _choose_tm(M, KC, Cout, tile_m):
    """Pick the M-tile: large (target 1024), VMEM-bounded, >=2 tiles if possible."""
    target = 1024 if tile_m is None else tile_m
    target = max(128, _round_up(target, 128))
    # Double-buffered per-unit-of-TM VMEM bytes: slab block (bf16) + y block (bf16).
    bytes_per_tm = 2 * (4 * KC * 2 + Cout * 2)
    vmem_ws_budget = 20 * 1024 * 1024          # safe for v7x 64 MiB VMEM
    cap = max(128, (vmem_ws_budget // bytes_per_tm) // 128 * 128)
    tm = min(target, cap, _round_up(M, 128))
    if M > 128:
        # Keep >= 2 grid steps so the "parallel" axis can shard across the two
        # v7x TensorCores (no effect on v5e/v6e, which have one core per chip).
        tm = min(tm, max(128, _round_up((M + 1) // 2, 128)))
    return tm


@functools.partial(jax.jit, static_argnames=("padding", "eps", "tile_m"))
def cmb_block(x_nchw, w_oihw, bias, gamma, beta, *, padding, eps=1e-5, tile_m=None):
    """Forward pass of CMBBolock.  NCHW in / NCHW out (PyTorch convention)."""
    N, Cin, H, W = x_nchw.shape
    Cout, Cin_w, KH, KW = w_oihw.shape
    assert Cin_w == Cin
    Ho = H + 2 * padding - KH + 1
    Wo = W + 2 * padding - KW + 1
    H2, W2 = Ho // 2, Wo // 2            # MaxPool2d(2,2) floors odd conv sizes
    M = N * H2 * W2
    KC = KH * KW * Cin

    TM = _choose_tm(M, KC, Cout, tile_m)
    M_pad = _round_up(M, TM)
    num_tiles = M_pad // TM

    # TODO(synk): for Cin beyond ~16-32 the wrapper-side im2col costs ~KH*KW x
    # the input bytes in HBM; the tap construction should then move inside the
    # kernel (halo-row DMA from an x ref in memory_space=pl.ANY) instead.
    x_nhwc = jnp.transpose(x_nchw, (0, 2, 3, 1))
    slab = _im2col_parity_slab(x_nhwc, padding, KH, KW, H2, W2, TM, M_pad)

    w2d = jnp.transpose(w_oihw, (0, 2, 3, 1)).reshape(Cout, KC).astype(jnp.bfloat16)
    b2 = bias.reshape(Cout, 1).astype(jnp.float32)

    # vmem_limit derived from the actual (double-buffered) working set.
    ws = 2 * (4 * KC * TM * 2 + Cout * TM * 2 + Cout * KC * 2 + 16 * Cout)
    vmem_limit = int(min(32 * 1024 * 1024, max(8 * 1024 * 1024, 2 * ws)))

    y_pre, s1, s2 = pl.pallas_call(
        _make_fused_kernel(TM),
        out_shape=(jax.ShapeDtypeStruct((Cout, M_pad), jnp.bfloat16),
                   jax.ShapeDtypeStruct((num_tiles, Cout, 1), jnp.float32),
                   jax.ShapeDtypeStruct((num_tiles, Cout, 1), jnp.float32)),
        grid=(num_tiles,),
        in_specs=[
            # TODO(synk): sweep pipeline_mode=pl.Buffered(3) on the slab spec
            # for large tiles if the VMEM budget allows.
            pl.BlockSpec((KC, 4 * TM), lambda i: (0, i)),
            pl.BlockSpec((Cout, KC), lambda i: (0, 0)),
            pl.BlockSpec((Cout, 1), lambda i: (0, 0)),
        ],
        out_specs=(pl.BlockSpec((Cout, TM), lambda i: (0, i)),
                   pl.BlockSpec((1, Cout, 1), lambda i: (i, 0, 0)),
                   pl.BlockSpec((1, Cout, 1), lambda i: (i, 0, 0))),
        compiler_params=pltpu.CompilerParams(
            dimension_semantics=("parallel",),
            vmem_limit_bytes=vmem_limit),
    )(slab, w2d, b2)

    # ---- tiny cross-tile reduction -> per-channel scale/shift (training BN) ----
    tot1 = jnp.sum(s1[:, :, 0], axis=0)                           # (Cout,)
    tot2 = jnp.sum(s2[:, :, 0], axis=0)
    n_pad = M_pad - M
    if n_pad:
        # Padded columns came from all-zero slab columns -> y there = relu(bias).
        y_pad = jnp.maximum(bias.astype(jnp.float32), 0.0)
        tot1 = tot1 - n_pad * y_pad
        tot2 = tot2 - n_pad * y_pad * y_pad
    mean = tot1 / M
    # TODO(synk): E[x^2]-E[x]^2 is cancellation-prone for tight tolerances;
    # switch to a two-pass / Welford reduction if accuracy requirements tighten.
    var = jnp.maximum(tot2 / M - mean * mean, 0.0)                # biased variance
    inv = lax.rsqrt(var + eps)
    g32 = gamma.astype(jnp.float32)
    scale = (g32 * inv).reshape(Cout, 1)
    shift = (beta.astype(jnp.float32) - mean * g32 * inv).reshape(Cout, 1)
    # TODO(synk): running_mean / running_var buffer updates (training-time side
    # effect of nn.BatchNorm2d) are not materialized; only the forward output.

    # ---- BN affine apply, fused by XLA with the un-flatten + NCHW transpose ----
    y = y_pre[:, :M].astype(jnp.float32) * scale + shift          # (Cout, M)
    return jnp.transpose(y.reshape(Cout, N, H2, W2), (1, 0, 2, 3))


# ---------------------------------------------------------------------------
# Pure-JAX f32 reference mirroring the PyTorch module (training mode).
# ---------------------------------------------------------------------------
def ref_forward(x_nchw, w_oihw, bias, gamma, beta, padding, eps=1e-5):
    x = jnp.transpose(x_nchw, (0, 2, 3, 1))
    w_hwio = jnp.transpose(w_oihw, (2, 3, 1, 0))
    y = lax.conv_general_dilated(
        x, w_hwio, window_strides=(1, 1),
        padding=[(padding, padding), (padding, padding)],
        dimension_numbers=('NHWC', 'HWIO', 'NHWC'))
    y = y + bias.reshape(1, 1, 1, -1)
    y = jnp.maximum(y, 0.0)
    y = lax.reduce_window(y, -jnp.inf, lax.max, (1, 2, 2, 1), (1, 2, 2, 1), 'VALID')
    mean = jnp.mean(y, axis=(0, 1, 2), keepdims=True)
    var = jnp.mean((y - mean) ** 2, axis=(0, 1, 2), keepdims=True)
    y = (y - mean) * lax.rsqrt(var + eps) * gamma.reshape(1, 1, 1, -1) \
        + beta.reshape(1, 1, 1, -1)
    return jnp.transpose(y, (0, 3, 1, 2))


if __name__ == "__main__":
    def run_case(key, N, Cin, Cout, H, W, K, PAD, tile_m=None):
        kx, kw, kb = jax.random.split(key, 3)
        x = jax.random.normal(kx, (N, Cin, H, W), jnp.float32)
        # PyTorch-style Conv2d init: U(-1/sqrt(fan_in), +); BN gamma=1, beta=0.
        bound = 1.0 / math.sqrt(Cin * K * K)
        w = jax.random.uniform(kw, (Cout, Cin, K, K), jnp.float32, -bound, bound)
        b = jax.random.uniform(kb, (Cout,), jnp.float32, -bound, bound)
        gamma = jnp.ones((Cout,), jnp.float32)
        beta = jnp.zeros((Cout,), jnp.float32)

        out = jax.block_until_ready(
            cmb_block(x, w, b, gamma, beta, padding=PAD, tile_m=tile_m))
        ref = jax.block_until_ready(ref_forward(x, w, b, gamma, beta, PAD))
        Ho, Wo = H + 2 * PAD - K + 1, W + 2 * PAD - K + 1
        assert out.shape == (N, Cout, Ho // 2, Wo // 2), out.shape
        # bf16 MXU inputs + bf16 pooled intermediate -> loosened tolerance vs f32.
        np.testing.assert_allclose(np.asarray(out), np.asarray(ref),
                                   rtol=8e-2, atol=8e-2)

    key = jax.random.PRNGKey(0)
    k1, k2, k3, k4 = jax.random.split(key, 4)
    # Primary shape from the module spec: N=2, Cin=4, Cout=8, 16x16, k=3, pad=1.
    run_case(k1, 2, 4, 8, 16, 16, 3, 1)
    # Multi-tile grid (M=512 -> 2 tiles of 256): exercises partial-stat reduce
    # and the >=2-tile megacore path.
    run_case(k2, 2, 4, 8, 32, 32, 3, 1)
    # Odd conv-output size: MaxPool2d floors; exercises padded-column stats fix.
    run_case(k3, 2, 4, 8, 15, 15, 3, 1)
    # Larger shape (M=2048 -> 2 tiles of 1024): exercises the big-tile path.
    run_case(k4, 2, 8, 16, 64, 64, 3, 1)

    print("KERNEL_OK")
</pallas_src>

<mosaic_0001>
module attributes {stable_mosaic.version = 11 : i64} {
  func.func @kernel(%arg0: i32, %arg1: memref<36x512xbf16, #tpu.memory_space<vmem>>, %arg2: memref<8x36xbf16, #tpu.memory_space<vmem>>, %arg3: memref<8x1xf32, #tpu.memory_space<vmem>>, %arg4: memref<8x128xbf16, #tpu.memory_space<vmem>>, %arg5: memref<1x8x1xf32, #tpu.memory_space<vmem>>, %arg6: memref<1x8x1xf32, #tpu.memory_space<vmem>>) attributes {dimension_semantics = [#tpu.dimension_semantics<parallel>], iteration_bounds = array<i64: 1>, scalar_prefetch = 0 : i64, scratch_operands = 0 : i64, tpu.core_type = #tpu.core_type<tc>, window_params = [{transform_indices = @transform_0, window_bounds = array<i64: 36, 512>}, {pipeline_mode = #tpu.pipeline_mode<synchronous>, transform_indices = @transform_1, window_bounds = array<i64: 8, 36>}, {pipeline_mode = #tpu.pipeline_mode<synchronous>, transform_indices = @transform_2, window_bounds = array<i64: 8, 1>}, {transform_indices = @transform_3, window_bounds = array<i64: 8, 128>}, {transform_indices = @transform_4, window_bounds = array<i64: 1, 8, 1>}, {transform_indices = @transform_5, window_bounds = array<i64: 1, 8, 1>}]} {
    %c0 = arith.constant 0 : index
    %c0_0 = arith.constant 0 : index
    %0 = vector.load %arg2[%c0, %c0_0] : memref<8x36xbf16, #tpu.memory_space<vmem>>, vector<8x36xbf16>
    %c0_1 = arith.constant 0 : index
    %c0_2 = arith.constant 0 : index
    %1 = vector.load %arg1[%c0_1, %c0_2] : memref<36x512xbf16, #tpu.memory_space<vmem>>, vector<36x512xbf16>
    %cst = arith.constant dense<0.000000e+00> : vector<8x512xf32>
    %2 = tpu.matmul %0, %1, %cst {dimension_numbers = #tpu.dot_dimension_numbers<[1], [0], [0], [1], [0, 0, 1, 1], [], []>} : vector<8x36xbf16>, vector<36x512xbf16>, vector<8x512xf32> -> vector<8x512xf32>
    %3 = vector.extract_strided_slice %2 {offsets = [0, 0], sizes = [8, 128], strides = [1, 1]} : vector<8x512xf32> to vector<8x128xf32>
    %4 = vector.extract_strided_slice %2 {offsets = [0, 128], sizes = [8, 128], strides = [1, 1]} : vector<8x512xf32> to vector<8x128xf32>
    %5 = arith.maximumf %3, %4 : vector<8x128xf32>
    %6 = vector.extract_strided_slice %2 {offsets = [0, 256], sizes = [8, 128], strides = [1, 1]} : vector<8x512xf32> to vector<8x128xf32>
    %7 = vector.extract_strided_slice %2 {offsets = [0, 384], sizes = [8, 128], strides = [1, 1]} : vector<8x512xf32> to vector<8x128xf32>
    %8 = arith.maximumf %6, %7 : vector<8x128xf32>
    %9 = arith.maximumf %5, %8 : vector<8x128xf32>
    %c0_3 = arith.constant 0 : index
    %c0_4 = arith.constant 0 : index
    %10 = vector.load %arg3[%c0_3, %c0_4] : memref<8x1xf32, #tpu.memory_space<vmem>>, vector<8x1xf32>
    %11 = vector.broadcast %10 : vector<8x1xf32> to vector<8x128xf32>
    %12 = arith.addf %9, %11 : vector<8x128xf32>
    %cst_5 = arith.constant 0.000000e+00 : f32
    %13 = vector.broadcast %cst_5 : f32 to vector<8x128xf32>
    %14 = arith.maximumf %12, %13 : vector<8x128xf32>
    %15 = arith.truncf %14 : vector<8x128xf32> to vector<8x128xbf16>
    %c0_6 = arith.constant 0 : index
    %c0_7 = arith.constant 0 : index
    %16 = vector.load %arg4[%c0_6, %c0_7] : memref<8x128xbf16, #tpu.memory_space<vmem>>, vector<8x128xbf16>
    tpu.vector_store %arg4[%c0_6, %c0_7], %15 {strides = array<i32>} : memref<8x128xbf16, #tpu.memory_space<vmem>>, vector<8x128xbf16>,
    %cst_8 = arith.constant dense<0.000000e+00> : vector<8xf32>
    %17 = vector.multi_reduction <add>, %14, %cst_8 [1] : vector<8x128xf32> to vector<8xf32>
    %18 = vector.shape_cast %17 : vector<8xf32> to vector<8x1xf32>
    %c0_9 = arith.constant 0 : index
    %c0_10 = arith.constant 0 : index
    %c0_11 = arith.constant 0 : index
    %19 = vector.load %arg5[%c0_9, %c0_10, %c0_11] : memref<1x8x1xf32, #tpu.memory_space<vmem>>, vector<1x8x1xf32>
    %20 = vector.shape_cast %19 : vector<1x8x1xf32> to vector<8x1xf32>
    %21 = vector.shape_cast %18 : vector<8x1xf32> to vector<1x8x1xf32>
    tpu.vector_store %arg5[%c0_9, %c0_10, %c0_11], %21 {strides = array<i32>} : memref<1x8x1xf32, #tpu.memory_space<vmem>>, vector<1x8x1xf32>,
    %22 = arith.mulf %14, %14 : vector<8x128xf32>
    %cst_12 = arith.constant dense<0.000000e+00> : vector<8xf32>
    %23 = vector.multi_reduction <add>, %22, %cst_12 [1] : vector<8x128xf32> to vector<8xf32>
    %24 = vector.shape_cast %23 : vector<8xf32> to vector<8x1xf32>
    %c0_13 = arith.constant 0 : index
    %c0_14 = arith.constant 0 : index
    %c0_15 = arith.constant 0 : index
    %25 = vector.load %arg6[%c0_13, %c0_14, %c0_15] : memref<1x8x1xf32, #tpu.memory_space<vmem>>, vector<1x8x1xf32>
    %26 = vector.shape_cast %25 : vector<1x8x1xf32> to vector<8x1xf32>
    %27 = vector.shape_cast %24 : vector<8x1xf32> to vector<1x8x1xf32>
    tpu.vector_store %arg6[%c0_13, %c0_14, %c0_15], %27 {strides = array<i32>} : memref<1x8x1xf32, #tpu.memory_space<vmem>>, vector<1x8x1xf32>,
    return
  }
  func.func @transform_0(%arg0: i32) -> (i32, i32) {
    %c0_i32 = arith.constant 0 : i32
    %c0_i32_0 = arith.constant 0 : i32
    return %c0_i32, %arg0 : i32, i32
  }
  func.func @transform_1(%arg0: i32) -> (i32, i32) {
    %c0_i32 = arith.constant 0 : i32
    %c0_i32_0 = arith.constant 0 : i32
    %c0_i32_1 = arith.constant 0 : i32
    return %c0_i32, %c0_i32_0 : i32, i32
  }
  func.func @transform_2(%arg0: i32) -> (i32, i32) {
    %c0_i32 = arith.constant 0 : i32
    %c0_i32_0 = arith.constant 0 : i32
    %c0_i32_1 = arith.constant 0 : i32
    return %c0_i32, %c0_i32_0 : i32, i32
  }
  func.func @transform_3(%arg0: i32) -> (i32, i32) {
    %c0_i32 = arith.constant 0 : i32
    %c0_i32_0 = arith.constant 0 : i32
    return %c0_i32, %arg0 : i32, i32
  }
  func.func @transform_4(%arg0: i32) -> (i32, i32, i32) {
    %c0_i32 = arith.constant 0 : i32
    %c0_i32_0 = arith.constant 0 : i32
    %c0_i32_1 = arith.constant 0 : i32
    return %arg0, %c0_i32, %c0_i32_0 : i32, i32, i32
  }
  func.func @transform_5(%arg0: i32) -> (i32, i32, i32) {
    %c0_i32 = arith.constant 0 : i32
    %c0_i32_0 = arith.constant 0 : i32
    %c0_i32_1 = arith.constant 0 : i32
    return %arg0, %c0_i32, %c0_i32_0 : i32, i32, i32
  }
}

</mosaic_0001>

<llo_original>
// kernel: cmb_block.1
$region0: #{cmb_block.1}
  #allocation0 [shape = 'u32[]', space=smem, size = 0x4, offset = 0x4, fixed_abs, tag = 'smem constant byte address 0x4 - core index']
  #allocation1 [shape = 'u32[72,128]{1,0:T(1,128)}', space=vmem, size = 0x9000, scoped, tag = 'internal scratch']
  %s0 = inlined_call_operand.vmem [shape: bf16[36,512], index: 0, kind: input, shape index: {}]
  %s1 = inlined_call_operand.vmem [shape: bf16[8,36], index: 1, kind: input, shape index: {}]
  %s2 = inlined_call_operand.vmem [shape: f32[8,1], index: 2, kind: input, shape index: {}]
  %s3 = inlined_call_operand.vmem [shape: bf16[8,128], index: 3, kind: output, shape index: {0}]
  %s4 = inlined_call_operand.vmem [shape: f32[1,8,1], index: 4, kind: output, shape index: {1}]
  %s5 = inlined_call_operand.vmem [shape: f32[1,8,1], index: 5, kind: output, shape index: {2}]
  %6 = xla_tuple %s3, %s4, %s5
  %s7 = sld [smem:[#allocation0]]
  $region38: #{cmb_block.1} parent=0
    _
  %s9 = ssub.s32 1, %s7
  %s10 = scalar_select 0, %s9, %s7
  // Predicated region
  $region2: #{cmb_block.1} parent=0 // pred_check
    _
  $region3: #{cmb_block.1} parent=0 // pred_check_branch
    %12 = sbr.rel (0) target = $region5
  $region4: #{cmb_block.1} parent=0 // pred_region
    _
  $region5: #{cmb_block.1} parent=0 // pred_fallthru
    _
  // Predicated region
  $region6: #{cmb_block.1} parent=0 // pred_check
    _
  $region7: #{cmb_block.1} parent=0 // pred_check_branch
    %14 = sbr.rel (0) target = $region9
  $region8: #{cmb_block.1} parent=0 // pred_region
    _
  $region9: #{cmb_block.1} parent=0 // pred_fallthru
    _
  // Predicated region
  $region10: #{cmb_block.1} parent=0 // pred_check
    _
  $region11: #{cmb_block.1} parent=0 // pred_check_branch
    %16 = sbr.rel (0) target = $region13
  $region12: #{cmb_block.1} parent=0 // pred_region
    _
  $region13: #{cmb_block.1} parent=0 // pred_fallthru
    _
  %v18 = vld [vmem:[%s1] sm:$0xf]
  %v19 = vld [vmem:[%s0] sm:$0xff]
  %v20 = vld [vmem:[%s0 + $0x8] sm:$0xff]
  %v21 = vld [vmem:[%s0 + $0x10] sm:$0xff]
  %v22 = vld [vmem:[%s0 + $0x18] sm:$0xff]
  %v23 = vld [vmem:[%s0 + $0x20] sm:$0xff]
  %v24 = vld [vmem:[%s0 + $0x28] sm:$0xff]
  %v25 = vld [vmem:[%s0 + $0x30] sm:$0xff]
  %v26 = vld [vmem:[%s0 + $0x38] sm:$0xff]
  %v27 = vld [vmem:[%s0 + $0x40] sm:$0x33]
  %v28 = vld [vmem:[%s0 + $0x48] sm:$0x33]
  %v39 = vunpack.c.l.b16 %v19
  %v40 = vunpack.c.h.b16 %v19
  %v41 = vunpack.c.l.b16 %v20
  %v42 = vunpack.c.h.b16 %v20
  %v43 = vunpack.c.l.b16 %v21
  %v44 = vunpack.c.h.b16 %v21
  %v45 = vunpack.c.l.b16 %v22
  %v46 = vunpack.c.h.b16 %v22
  %v47 = vunpack.c.l.b16 %v23
  %v48 = vunpack.c.h.b16 %v23
  %v49 = vunpack.c.l.b16 %v24
  %v50 = vunpack.c.h.b16 %v24
  %v51 = vunpack.c.l.b16 %v25
  %v52 = vunpack.c.h.b16 %v25
  %v53 = vunpack.c.l.b16 %v26
  %v54 = vunpack.c.h.b16 %v26
  %v55 = vunpack.c.l.b16 %v27
  %v56 = vunpack.c.h.b16 %v27
  %v57 = vunpack.c.l.b16 %v28
  %v58 = vunpack.c.h.b16 %v28
  %v59 = vpack.c.b16 %v43, %v39
  %v60 = vpack.c.b16 %v44, %v40
  %v61 = vpack.c.b16 %v45, %v41
  %v62 = vpack.c.b16 %v46, %v42
  %v63 = vpack.c.b16 %v51, %v47
  %v64 = vpack.c.b16 %v52, %v48
  %v65 = vpack.c.b16 %v53, %v49
  %v66 = vpack.c.b16 %v54, %v50
  %v67 = vpack.c.b16 %v55, %v55
  %v68 = vpack.c.b16 %v56, %v56
  %v69 = vpack.c.b16 %v57, %v57
  %v70 = vpack.c.b16 %v58, %v58
  %vm79 = vcmask 293888
  %v81 = vsel %vm79, %v18, 0
  %vm83 = vcmask 1041408
  %v85 = vsel %vm83, %v67, 0
  %v88 = vsel %vm83, %v68, 0
  %v91 = vsel %vm83, %v69, 0
  %v94 = vsel %vm83, %v70, 0
  %96 = vmatpush.bf16.msra.mxu0 0
  %97 = vmatpush.bf16.msra.mxu0 0
  %98 = vmatpush.bf16.msra.mxu0 0
  %99 = vmatpush.bf16.msra.mxu0 0
  %100 = vmatpush.bf16.msra.mxu0 0
  %101 = vmatpush.bf16.msra.mxu0 %v85
  %102 = vmatpush.bf16.msra.mxu0 %v63
  %103 = vmatpush.bf16.msra.mxu0 %v59
  %104 = vmatmul.bf16.gmra.mxu0 %v81
  %v105 = vpop.f32.mrf.mxu0
  %v106 = vadd.f32 0.0, %v105
  %v107 = vpop.f32.mrf.mxu0
  %108 = vdwg.mxu0
  %109 = vmatpush.bf16.msra.mxu0 0
  %110 = vmatpush.bf16.msra.mxu0 0
  %111 = vmatpush.bf16.msra.mxu0 0
  %112 = vmatpush.bf16.msra.mxu0 0
  %113 = vmatpush.bf16.msra.mxu0 0
  %114 = vmatpush.bf16.msra.mxu0 %v88
  %115 = vmatpush.bf16.msra.mxu0 %v64
  %116 = vmatpush.bf16.msra.mxu0 %v60
  %117 = vmatmul.bf16.gmra.mxu0 %v81
  %v118 = vpop.f32.mrf.mxu0
  %v119 = vadd.f32 0.0, %v118
  %v120 = vpop.f32.mrf.mxu0
  %121 = vdwg.mxu0
  %122 = vmatpush.bf16.msra.mxu0 0
  %123 = vmatpush.bf16.msra.mxu0 0
  %124 = vmatpush.bf16.msra.mxu0 0
  %125 = vmatpush.bf16.msra.mxu0 0
  %126 = vmatpush.bf16.msra.mxu0 0
  %127 = vmatpush.bf16.msra.mxu0 %v91
  %128 = vmatpush.bf16.msra.mxu0 %v65
  %129 = vmatpush.bf16.msra.mxu0 %v61
  %130 = vmatmul.bf16.gmra.mxu0 %v81
  %v131 = vpop.f32.mrf.mxu0
  %v132 = vadd.f32 0.0, %v131
  %v133 = vpop.f32.mrf.mxu0
  %134 = vdwg.mxu0
  %135 = vmatpush.bf16.msra.mxu0 0
  %136 = vmatpush.bf16.msra.mxu0 0
  %137 = vmatpush.bf16.msra.mxu0 0
  %138 = vmatpush.bf16.msra.mxu0 0
  %139 = vmatpush.bf16.msra.mxu0 0
  %140 = vmatpush.bf16.msra.mxu0 %v94
  %141 = vmatpush.bf16.msra.mxu0 %v66
  %142 = vmatpush.bf16.msra.mxu0 %v62
  %143 = vmatmul.bf16.gmra.mxu0 %v81
  %v144 = vpop.f32.mrf.mxu0
  %v145 = vadd.f32 0.0, %v144
  %v146 = vpop.f32.mrf.mxu0
  %147 = vdwg.mxu0
  %v148 = vmax.f32 %v106, %v119
  %v149 = vmax.f32 %v132, %v145
  %v150 = vmax.f32 %v148, %v149
  %v151 = vld [vmem:[%s2] sm:$0xff]
  %153 = vset.pattern.permute.xlu0 0
  %154 = vperm.xlu0 %153, %v151
  %v155 = vpop.permute.xlu0 %154
  %v157 = vadd.f32 %v150, %v155
  %v158 = vmax.f32 %v157, 0.0
  %v159 = vpack.c.bf16 %v158, %v158
  %160 = vst [vmem:[%s3] sm:$0xf] %v159
  %161 = vadd.xlane.f32.xlu0 %v158
  %v162 = vpop.xlane.xlu0 %161
  %vm163 = vcmask 7168
  %164 = vst.msk [vmem:[%s4] sm:$0xff] %vm163, %v162
  %v165 = vmul.f32 %v158, %v158
  %166 = vadd.xlane.f32.xlu0 %v165
  %v167 = vpop.xlane.xlu0 %166
  %168 = vst.msk [vmem:[%s5] sm:$0xff] %vm163, %v167
  // Predicated region
  $region14: #{cmb_block.1} parent=0 // pred_check
    _
  $region15: #{cmb_block.1} parent=0 // pred_check_branch
    %170 = sbr.rel (0) target = $region17
  $region16: #{cmb_block.1} parent=0 // pred_region
    _
  $region17: #{cmb_block.1} parent=0 // pred_fallthru
    _
  // Predicated region
  $region18: #{cmb_block.1} parent=0 // pred_check
    _
  $region19: #{cmb_block.1} parent=0 // pred_check_branch
    %172 = sbr.rel (0) target = $region21
  $region20: #{cmb_block.1} parent=0 // pred_region
    _
  $region21: #{cmb_block.1} parent=0 // pred_fallthru
    _
  // Predicated region
  $region22: #{cmb_block.1} parent=0 // pred_check
    _
  $region23: #{cmb_block.1} parent=0 // pred_check_branch
    %174 = sbr.rel (0) target = $region25
  $region24: #{cmb_block.1} parent=0 // pred_region
    _
  $region25: #{cmb_block.1} parent=0 // pred_fallthru
    _
  // Predicated region
  $region26: #{cmb_block.1} parent=0 // pred_check
    _
  $region27: #{cmb_block.1} parent=0 // pred_check_branch
    %176 = sbr.rel (0) target = $region29
  $region28: #{cmb_block.1} parent=0 // pred_region
    _
  $region29: #{cmb_block.1} parent=0 // pred_fallthru
    _
  // Predicated region
  $region30: #{cmb_block.1} parent=0 // pred_check
    _
  $region31: #{cmb_block.1} parent=0 // pred_check_branch
    %178 = sbr.rel (0) target = $region33
  $region32: #{cmb_block.1} parent=0 // pred_region
    _
  $region33: #{cmb_block.1} parent=0 // pred_fallthru
    _
  // Predicated region
  $region34: #{cmb_block.1} parent=0 // pred_check
    _
  $region35: #{cmb_block.1} parent=0 // pred_check_branch
    %180 = sbr.rel (0) target = $region37
  $region36: #{cmb_block.1} parent=0 // pred_region
    _
  $region37: #{cmb_block.1} parent=0 // pred_fallthru
    _

</llo_original>
